<compile_context>
chip_gen: v7x
topology: tpu7x:2x2x1
jax: 0.10.0
libtpu: 0.0.40
codegen_flags: <defaults>
</compile_context>

<pallas_src>
import jax
import jax.numpy as jnp
from jax.experimental import pallas as pl
from jax.experimental.pallas import tpu as pltpu

HIDDEN = 64
LANE = 128       # lane width: output feature dim is zero-padded to this
ROW_ALIGN = 16   # row-tile granularity (bf16-friendly sublane multiple)


def _round_up(x, m):
    return ((x + m - 1) // m) * m


def dqn_kernel(x_ref, w1_ref, b1_ref, w2_ref, b2_ref, w3_ref, b3_ref, o_ref):
    # fc1 + relu  (bf16 MXU inputs, f32 accumulation; cast is a no-op if the
    # producer already hands us bf16 activations)
    x = x_ref[...].astype(w1_ref.dtype)
    h1 = jnp.dot(x, w1_ref[...], preferred_element_type=jnp.float32)
    h1 = jnp.maximum(h1 + b1_ref[...], 0.0)
    # fc2 + relu
    h2 = jnp.dot(h1.astype(w2_ref.dtype), w2_ref[...],
                 preferred_element_type=jnp.float32)
    h2 = jnp.maximum(h2 + b2_ref[...], 0.0)
    # output head (no activation) -- lane-padded to 128 columns, stored bf16
    # to halve the dominant HBM writeback.
    o = jnp.dot(h2.astype(w3_ref.dtype), w3_ref[...],
                preferred_element_type=jnp.float32)
    o_ref[...] = (o + b3_ref[...]).astype(o_ref.dtype)


def dqn_forward(x, params, action_size, *, block_rows=4096,
                out_dtype=jnp.float32):
    """x: (B, state_size) f32 or bf16. params: pre-transposed (in,out) bf16
    weights, f32 (1,out) biases, output head lane-padded to LANE columns.
    Returns (B, action_size) in `out_dtype`."""
    B, S = x.shape
    A_pad = params["w3"].shape[1]  # == LANE

    # --- Tile / grid selection -------------------------------------------
    # 1) Align the batch to the row granularity first (NOT to TM), so padding
    #    never blows up to ~2x at unlucky batch sizes.
    B8 = _round_up(B, ROW_ALIGN)
    # 2) Pick the number of grid steps from the requested block size.
    TM0 = max(ROW_ALIGN, min(block_rows, B8))
    n_steps = pl.cdiv(B8, TM0)
    # 3) v7x megacore: make sure the "parallel" batch axis has >= 2 steps when
    #    the batch is big enough to amortize per-step overhead (no-op on
    #    single-TensorCore v5e/v6e beyond a little extra overhead).
    if n_steps == 1 and B8 >= 2048:
        n_steps = 2
    # 4) Re-balance TM so padding is at most ROW_ALIGN-1 rows per step.
    TM = _round_up(pl.cdiv(B8, n_steps), ROW_ALIGN)
    B_pad = n_steps * TM
    if B_pad != B:
        # NOTE: padded rows are NOT numerically zero after the kernel (relu of
        # the bias propagates). They are sliced off below; mask them if a
        # future version reduces across the batch inside the kernel.
        x = jnp.pad(x, ((0, B_pad - B), (0, 0)))

    grid = (n_steps,)

    def resident(shape):
        # Full-array block with a constant index_map -> stays in VMEM across
        # all grid steps (weights/biases total ~26 KiB, fetched once).
        return pl.BlockSpec(shape, lambda i: (0, 0))

    flops = 2 * B_pad * (S * HIDDEN + HIDDEN * HIDDEN + HIDDEN * A_pad)
    bytes_accessed = (
        int(x.size) * x.dtype.itemsize
        + sum(int(p.size) * p.dtype.itemsize for p in params.values())
        + B_pad * A_pad * 2  # bf16 output writeback
    )

    out = pl.pallas_call(
        dqn_kernel,
        out_shape=jax.ShapeDtypeStruct((B_pad, A_pad), jnp.bfloat16),
        grid=grid,
        in_specs=[
            pl.BlockSpec((TM, S), lambda i: (i, 0)),   # x: tiled over batch
            resident(params["w1"].shape),
            resident(params["b1"].shape),
            resident(params["w2"].shape),
            resident(params["b2"].shape),
            resident(params["w3"].shape),
            resident(params["b3"].shape),
        ],
        out_specs=pl.BlockSpec((TM, A_pad), lambda i: (i, 0)),
        compiler_params=pltpu.CompilerParams(
            dimension_semantics=("parallel",),
        ),
        cost_estimate=pl.CostEstimate(
            flops=flops, transcendentals=0, bytes_accessed=bytes_accessed
        ),
    )(x, params["w1"], params["b1"], params["w2"], params["b2"],
      params["w3"], params["b3"])

    # Small compacting slice+cast over only the useful region; callers that
    # consume bf16 (or the padded array) directly can pass out_dtype=bfloat16.
    return out[:B, :action_size].astype(out_dtype)


def init_params(key, state_size, action_size, hidden=HIDDEN):
    """PyTorch-Linear-like init U(-1/sqrt(fan_in), 1/sqrt(fan_in)).
    Weights stored pre-transposed (in, out) in bf16; biases f32 (1, out).
    The output head is zero-padded from action_size to LANE columns."""
    ks = jax.random.split(key, 6)

    def linear(kw, kb, fan_in, fan_out):
        bound = 1.0 / jnp.sqrt(jnp.float32(fan_in))
        w = jax.random.uniform(kw, (fan_in, fan_out), jnp.float32, -bound, bound)
        b = jax.random.uniform(kb, (1, fan_out), jnp.float32, -bound, bound)
        return w, b

    w1, b1 = linear(ks[0], ks[1], state_size, hidden)
    w2, b2 = linear(ks[2], ks[3], hidden, hidden)
    w3, b3 = linear(ks[4], ks[5], hidden, action_size)

    # Lane-pad the output head with zero columns (sliced off in the wrapper).
    w3 = jnp.pad(w3, ((0, 0), (0, LANE - action_size)))
    b3 = jnp.pad(b3, ((0, 0), (0, LANE - action_size)))

    return {
        "w1": w1.astype(jnp.bfloat16), "b1": b1,
        "w2": w2.astype(jnp.bfloat16), "b2": b2,
        "w3": w3.astype(jnp.bfloat16), "b3": b3,
    }


def dqn_reference(x, p, action_size):
    """Pure-JAX reference using identical bf16 weights + f32 accumulation."""
    h1 = jnp.maximum(
        jnp.dot(x.astype(jnp.bfloat16), p["w1"],
                preferred_element_type=jnp.float32) + p["b1"], 0.0)
    h2 = jnp.maximum(
        jnp.dot(h1.astype(jnp.bfloat16), p["w2"],
                preferred_element_type=jnp.float32) + p["b2"], 0.0)
    o = jnp.dot(h2.astype(jnp.bfloat16), p["w3"],
                preferred_element_type=jnp.float32) + p["b3"]
    return o[:, :action_size]


if __name__ == "__main__":
    key = jax.random.PRNGKey(0)
    k_x, k_p = jax.random.split(key)

    batch = 8
    state_size = 16
    action_size = 4

    x = jax.random.normal(k_x, (batch, state_size), dtype=jnp.float32)
    params = init_params(k_p, state_size, action_size)

    out = dqn_forward(x, params, action_size)
    out = jax.block_until_ready(out)

    ref = dqn_reference(x, params, action_size)
    assert out.shape == (batch, action_size)
    # Kernel output went through a bf16 store; allow bf16-rounding tolerance.
    assert jnp.allclose(out, ref, atol=3e-2, rtol=3e-2), (
        float(jnp.max(jnp.abs(out - ref))))

    print("KERNEL_OK")
</pallas_src>

<mosaic_0001>
module attributes {stable_mosaic.version = 11 : i64} {
  func.func @dqn_kernel(%arg0: i32, %arg1: memref<16x16xf32, #tpu.memory_space<vmem>>, %arg2: memref<16x64xbf16, #tpu.memory_space<vmem>>, %arg3: memref<1x64xf32, #tpu.memory_space<vmem>>, %arg4: memref<64x64xbf16, #tpu.memory_space<vmem>>, %arg5: memref<1x64xf32, #tpu.memory_space<vmem>>, %arg6: memref<64x128xbf16, #tpu.memory_space<vmem>>, %arg7: memref<1x128xf32, #tpu.memory_space<vmem>>, %arg8: memref<16x128xbf16, #tpu.memory_space<vmem>>) attributes {dimension_semantics = [#tpu.dimension_semantics<parallel>], iteration_bounds = array<i64: 1>, scalar_prefetch = 0 : i64, scratch_operands = 0 : i64, tpu.core_type = #tpu.core_type<tc>, window_params = [{transform_indices = @transform_0, window_bounds = array<i64: 16, 16>}, {pipeline_mode = #tpu.pipeline_mode<synchronous>, transform_indices = @transform_1, window_bounds = array<i64: 16, 64>}, {pipeline_mode = #tpu.pipeline_mode<synchronous>, transform_indices = @transform_2, window_bounds = array<i64: 1, 64>}, {pipeline_mode = #tpu.pipeline_mode<synchronous>, transform_indices = @transform_3, window_bounds = array<i64: 64, 64>}, {pipeline_mode = #tpu.pipeline_mode<synchronous>, transform_indices = @transform_4, window_bounds = array<i64: 1, 64>}, {pipeline_mode = #tpu.pipeline_mode<synchronous>, transform_indices = @transform_5, window_bounds = array<i64: 64, 128>}, {pipeline_mode = #tpu.pipeline_mode<synchronous>, transform_indices = @transform_6, window_bounds = array<i64: 1, 128>}, {transform_indices = @transform_7, window_bounds = array<i64: 16, 128>}]} {
    %c0 = arith.constant 0 : index
    %c0_0 = arith.constant 0 : index
    %0 = vector.load %arg1[%c0, %c0_0] : memref<16x16xf32, #tpu.memory_space<vmem>>, vector<16x16xf32>
    %1 = arith.truncf %0 : vector<16x16xf32> to vector<16x16xbf16>
    %c0_1 = arith.constant 0 : index
    %c0_2 = arith.constant 0 : index
    %2 = vector.load %arg2[%c0_1, %c0_2] : memref<16x64xbf16, #tpu.memory_space<vmem>>, vector<16x64xbf16>
    %cst = arith.constant dense<0.000000e+00> : vector<16x64xf32>
    %3 = tpu.matmul %1, %2, %cst {dimension_numbers = #tpu.dot_dimension_numbers<[1], [0], [0], [1], [0, 0, 1, 1], [], []>} : vector<16x16xbf16>, vector<16x64xbf16>, vector<16x64xf32> -> vector<16x64xf32>
    %c0_3 = arith.constant 0 : index
    %c0_4 = arith.constant 0 : index
    %4 = vector.load %arg3[%c0_3, %c0_4] : memref<1x64xf32, #tpu.memory_space<vmem>>, vector<1x64xf32>
    %5 = vector.broadcast %4 : vector<1x64xf32> to vector<16x64xf32>
    %6 = arith.addf %3, %5 : vector<16x64xf32>
    %cst_5 = arith.constant 0.000000e+00 : f32
    %7 = vector.broadcast %cst_5 : f32 to vector<16x64xf32>
    %8 = arith.maximumf %6, %7 : vector<16x64xf32>
    %9 = arith.truncf %8 : vector<16x64xf32> to vector<16x64xbf16>
    %c0_6 = arith.constant 0 : index
    %c0_7 = arith.constant 0 : index
    %10 = vector.load %arg4[%c0_6, %c0_7] : memref<64x64xbf16, #tpu.memory_space<vmem>>, vector<64x64xbf16>
    %cst_8 = arith.constant dense<0.000000e+00> : vector<16x64xf32>
    %11 = tpu.matmul %9, %10, %cst_8 {dimension_numbers = #tpu.dot_dimension_numbers<[1], [0], [0], [1], [0, 0, 1, 1], [], []>} : vector<16x64xbf16>, vector<64x64xbf16>, vector<16x64xf32> -> vector<16x64xf32>
    %c0_9 = arith.constant 0 : index
    %c0_10 = arith.constant 0 : index
    %12 = vector.load %arg5[%c0_9, %c0_10] : memref<1x64xf32, #tpu.memory_space<vmem>>, vector<1x64xf32>
    %13 = vector.broadcast %12 : vector<1x64xf32> to vector<16x64xf32>
    %14 = arith.addf %11, %13 : vector<16x64xf32>
    %cst_11 = arith.constant 0.000000e+00 : f32
    %15 = vector.broadcast %cst_11 : f32 to vector<16x64xf32>
    %16 = arith.maximumf %14, %15 : vector<16x64xf32>
    %17 = arith.truncf %16 : vector<16x64xf32> to vector<16x64xbf16>
    %c0_12 = arith.constant 0 : index
    %c0_13 = arith.constant 0 : index
    %18 = vector.load %arg6[%c0_12, %c0_13] : memref<64x128xbf16, #tpu.memory_space<vmem>>, vector<64x128xbf16>
    %cst_14 = arith.constant dense<0.000000e+00> : vector<16x128xf32>
    %19 = tpu.matmul %17, %18, %cst_14 {dimension_numbers = #tpu.dot_dimension_numbers<[1], [0], [0], [1], [0, 0, 1, 1], [], []>} : vector<16x64xbf16>, vector<64x128xbf16>, vector<16x128xf32> -> vector<16x128xf32>
    %c0_15 = arith.constant 0 : index
    %c0_16 = arith.constant 0 : index
    %20 = vector.load %arg7[%c0_15, %c0_16] : memref<1x128xf32, #tpu.memory_space<vmem>>, vector<1x128xf32>
    %21 = vector.broadcast %20 : vector<1x128xf32> to vector<16x128xf32>
    %22 = arith.addf %19, %21 : vector<16x128xf32>
    %23 = arith.truncf %22 : vector<16x128xf32> to vector<16x128xbf16>
    %c0_17 = arith.constant 0 : index
    %c0_18 = arith.constant 0 : index
    %24 = vector.load %arg8[%c0_17, %c0_18] : memref<16x128xbf16, #tpu.memory_space<vmem>>, vector<16x128xbf16>
    tpu.vector_store %arg8[%c0_17, %c0_18], %23 {strides = array<i32>} : memref<16x128xbf16, #tpu.memory_space<vmem>>, vector<16x128xbf16>,
    return
  }
  func.func @transform_0(%arg0: i32) -> (i32, i32) {
    %c0_i32 = arith.constant 0 : i32
    %c0_i32_0 = arith.constant 0 : i32
    return %arg0, %c0_i32 : i32, i32
  }
  func.func @transform_1(%arg0: i32) -> (i32, i32) {
    %c0_i32 = arith.constant 0 : i32
    %c0_i32_0 = arith.constant 0 : i32
    %c0_i32_1 = arith.constant 0 : i32
    return %c0_i32, %c0_i32_0 : i32, i32
  }
  func.func @transform_2(%arg0: i32) -> (i32, i32) {
    %c0_i32 = arith.constant 0 : i32
    %c0_i32_0 = arith.constant 0 : i32
    %c0_i32_1 = arith.constant 0 : i32
    return %c0_i32, %c0_i32_0 : i32, i32
  }
  func.func @transform_3(%arg0: i32) -> (i32, i32) {
    %c0_i32 = arith.constant 0 : i32
    %c0_i32_0 = arith.constant 0 : i32
    %c0_i32_1 = arith.constant 0 : i32
    return %c0_i32, %c0_i32_0 : i32, i32
  }
  func.func @transform_4(%arg0: i32) -> (i32, i32) {
    %c0_i32 = arith.constant 0 : i32
    %c0_i32_0 = arith.constant 0 : i32
    %c0_i32_1 = arith.constant 0 : i32
    return %c0_i32, %c0_i32_0 : i32, i32
  }
  func.func @transform_5(%arg0: i32) -> (i32, i32) {
    %c0_i32 = arith.constant 0 : i32
    %c0_i32_0 = arith.constant 0 : i32
    %c0_i32_1 = arith.constant 0 : i32
    return %c0_i32, %c0_i32_0 : i32, i32
  }
  func.func @transform_6(%arg0: i32) -> (i32, i32) {
    %c0_i32 = arith.constant 0 : i32
    %c0_i32_0 = arith.constant 0 : i32
    %c0_i32_1 = arith.constant 0 : i32
    return %c0_i32, %c0_i32_0 : i32, i32
  }
  func.func @transform_7(%arg0: i32) -> (i32, i32) {
    %c0_i32 = arith.constant 0 : i32
    %c0_i32_0 = arith.constant 0 : i32
    return %arg0, %c0_i32 : i32, i32
  }
}

</mosaic_0001>

<llo_original>
// kernel: tpu_custom_call.1
$region0: #{tpu_custom_call.1}
  #allocation0 [shape = 'u32[]', space=smem, size = 0x4, offset = 0x4, fixed_abs, tag = 'smem constant byte address 0x4 - core index']
  #allocation1 [shape = 'u32[144,128]{1,0:T(1,128)}', space=vmem, size = 0x12000, scoped, tag = 'internal scratch']
  %s0 = inlined_call_operand.hbm [shape: f32[16,16], index: 0, kind: input, shape index: {}]
  %s1 = inlined_call_operand.hbm [shape: bf16[16,64], index: 1, kind: input, shape index: {}]
  %s2 = inlined_call_operand.vmem [shape: f32[1,64], index: 2, kind: input, shape index: {}]
  %s3 = inlined_call_operand.hbm [shape: bf16[64,64], index: 3, kind: input, shape index: {}]
  %s4 = inlined_call_operand.vmem [shape: f32[1,64], index: 4, kind: input, shape index: {}]
  %s5 = inlined_call_operand.hbm [shape: bf16[64,128], index: 5, kind: input, shape index: {}]
  %s6 = inlined_call_operand.vmem [shape: f32[1,128], index: 6, kind: input, shape index: {}]
  %s7 = inlined_call_operand.hbm [shape: bf16[16,128], index: 7, kind: output, shape index: {}]
  %s8 = sld [smem:[#allocation0]]
  $region54: #{tpu_custom_call.1} parent=0
    _
  %s10 = ssub.s32 1, %s8
  %s11 = scalar_select 0, %s10, %s8
  $region1: #{tpu_custom_call.1} parent=0
    #allocation2 [shape = 'u8[8192]{0}', space=vmem, size = 0x2000, scoped, tag = 'input window, operand 0, single buffered']
    #allocation3 [shape = 's32[1]{0}', space=sflag, size = 0x4, scoped, tag = 'scoped memory for tpu_custom_call.1']
    #allocation4 [shape = 's32[1]{0}', space=sflag, size = 0x4, scoped, tag = 'scoped memory for tpu_custom_call.1']
    #allocation5 [shape = 'u8[4096]{0}', space=vmem, size = 0x1000, scoped, tag = 'input window, operand 1, single buffered']
    #allocation6 [shape = 's32[1]{0}', space=sflag, size = 0x4, scoped, tag = 'scoped memory for tpu_custom_call.1']
    #allocation7 [shape = 'u8[16384]{0}', space=vmem, size = 0x4000, scoped, tag = 'input window, operand 3, single buffered']
    #allocation8 [shape = 'u8[16384]{0}', space=vmem, size = 0x4000, scoped, tag = 'input window, operand 5, single buffered']
    #allocation9 [shape = 's32[1]{0}', space=sflag, size = 0x4, scoped, tag = 'scoped memory for tpu_custom_call.1']
    #allocation10 [shape = 'u8[4096]{0}', space=vmem, size = 0x1000, scoped, tag = 'output window, operand 0, single buffered']
    %12 = vsyncpa [#allocation3], 0
    %13 = vsyncpa [#allocation6], 0
    %14 = vsyncpa [#allocation9], 0
    %15 = vsyncpa [#allocation4], 0
    // Predicated region
    $region2: #{tpu_custom_call.1} parent=1 // pred_check
      _
    $region3: #{tpu_custom_call.1} parent=1 // pred_check_branch
      %17 = sbr.rel (0) target = $region5
    $region4: #{tpu_custom_call.1} parent=1 // pred_region
      %s19 = ssub.s32 256, 256
      %20 = vsyncadd [#allocation3], %s19
      %s21 = sshll.u32 [#allocation2], 4
      %s22 = int_to_ptr.vmem [resolvable:$true] %s21
      %27 = dma.hbm_to_vmem [thread:$0]  %s0, 256, %s22, [#allocation3], 128, 128, 8
    $region5: #{tpu_custom_call.1} parent=1 // pred_fallthru
      _
    // Predicated region
    $region6: #{tpu_custom_call.1} parent=1 // pred_check
      _
    $region7: #{tpu_custom_call.1} parent=1 // pred_check_branch
      %29 = sbr.rel (0) target = $region9
    $region8: #{tpu_custom_call.1} parent=1 // pred_region
      %s31 = ssub.s32 128, 128
      %32 = vsyncadd [#allocation6], %s31
      %s33 = sshll.u32 [#allocation5], 4
      %s34 = int_to_ptr.vmem [resolvable:$true] %s33
      %39 = dma.hbm_to_vmem [thread:$0]  %s1, 128, %s34, [#allocation6], 64, 64, 4
    $region9: #{tpu_custom_call.1} parent=1 // pred_fallthru
      _
    // Predicated region
    $region10: #{tpu_custom_call.1} parent=1 // pred_check
      _
    $region11: #{tpu_custom_call.1} parent=1 // pred_check_branch
      %41 = sbr.rel (0) target = $region13
    $region12: #{tpu_custom_call.1} parent=1 // pred_region
      _
    $region13: #{tpu_custom_call.1} parent=1 // pred_fallthru
      _
    // Predicated region
    $region14: #{tpu_custom_call.1} parent=1 // pred_check
      _
    $region15: #{tpu_custom_call.1} parent=1 // pred_check_branch
      %43 = sbr.rel (0) target = $region17
    $region16: #{tpu_custom_call.1} parent=1 // pred_region
      %s45 = ssub.s32 512, 512
      %46 = vsyncadd [#allocation6], %s45
      %s47 = sshll.u32 [#allocation7], 4
      %s48 = int_to_ptr.vmem [resolvable:$true] %s47
      %53 = dma.hbm_to_vmem [thread:$0]  %s3, 512, %s48, [#allocation6], 64, 64, 4
    $region17: #{tpu_custom_call.1} parent=1 // pred_fallthru
      _
    // Predicated region
    $region18: #{tpu_custom_call.1} parent=1 // pred_check
      _
    $region19: #{tpu_custom_call.1} parent=1 // pred_check_branch
      %55 = sbr.rel (0) target = $region21
    $region20: #{tpu_custom_call.1} parent=1 // pred_region
      _
    $region21: #{tpu_custom_call.1} parent=1 // pred_fallthru
      _
    // Predicated region
    $region22: #{tpu_custom_call.1} parent=1 // pred_check
      _
    $region23: #{tpu_custom_call.1} parent=1 // pred_check_branch
      %57 = sbr.rel (0) target = $region25
    $region24: #{tpu_custom_call.1} parent=1 // pred_region
      %s59 = ssub.s32 512, 512
      %60 = vsyncadd [#allocation9], %s59
      %s61 = sshll.u32 [#allocation8], 4
      %s62 = int_to_ptr.vmem [resolvable:$true] %s61
      %67 = dma.hbm_to_vmem [thread:$0]  %s5, 512, %s62, [#allocation9], 64, 64, 4
    $region25: #{tpu_custom_call.1} parent=1 // pred_fallthru
      _
    // Predicated region
    $region26: #{tpu_custom_call.1} parent=1 // pred_check
      _
    $region27: #{tpu_custom_call.1} parent=1 // pred_check_branch
      %69 = sbr.rel (0) target = $region29
    $region28: #{tpu_custom_call.1} parent=1 // pred_region
      _
    $region29: #{tpu_custom_call.1} parent=1 // pred_fallthru
      _
    // Predicated region
    $region30: #{tpu_custom_call.1} parent=1 // pred_check
      _
    $region31: #{tpu_custom_call.1} parent=1 // pred_check_branch
      %71 = sbr.rel (0) target = $region33
    $region32: #{tpu_custom_call.1} parent=1 // pred_region
      %72 = dma.done [#allocation3], 256
    $region33: #{tpu_custom_call.1} parent=1 // pred_fallthru
      _
    // Predicated region
    $region34: #{tpu_custom_call.1} parent=1 // pred_check
      _
    $region35: #{tpu_custom_call.1} parent=1 // pred_check_branch
      %74 = sbr.rel (0) target = $region37
    $region36: #{tpu_custom_call.1} parent=1 // pred_region
      %75 = dma.done [#allocation6], 128
    $region37: #{tpu_custom_call.1} parent=1 // pred_fallthru
      _
    // Predicated region
    $region38: #{tpu_custom_call.1} parent=1 // pred_check
      _
    $region39: #{tpu_custom_call.1} parent=1 // pred_check_branch
      %77 = sbr.rel (0) target = $region41
    $region40: #{tpu_custom_call.1} parent=1 // pred_region
      %78 = dma.done [#allocation6], 512
    $region41: #{tpu_custom_call.1} parent=1 // pred_fallthru
      _
    // Predicated region
    $region42: #{tpu_custom_call.1} parent=1 // pred_check
      _
    $region43: #{tpu_custom_call.1} parent=1 // pred_check_branch
      %80 = sbr.rel (0) target = $region45
    $region44: #{tpu_custom_call.1} parent=1 // pred_region
      %81 = dma.done [#allocation9], 512
    $region45: #{tpu_custom_call.1} parent=1 // pred_fallthru
      _
    %v83 = vld [vmem:[#allocation2] sm:$0xff]
    %v84 = vld [vmem:[#allocation2 + $0x8] sm:$0xff]
    %v85 = vpack.c.bf16 %v84, %v83
    %v86 = vld [vmem:[#allocation5] sm:$0xf]
    %v87 = vld [vmem:[#allocation5 + $0x4] sm:$0xf]
    %v88 = vld [vmem:[%s2] sm:$0x1]
    %v90 = vlaneseq
    %v91 = vshrl.u32 %v90, 7
    %v92 = vsub.s32 0, %v91
    %v93 = vrot.slane %v88, %v92
    %v97 = vunpack.c.l.b16 %v86
    %v98 = vunpack.c.l.b16 %v87
    %v99 = vpack.c.b16 %v98, %v97
    %vm101 = vcmask 130048
    %v103 = vsel %vm101, %v85, 0
    %105 = vmatprep.subr.bf16.mxu0 0
    %106 = vmatpush1.bf16.msra.mxu0 %v99
    %107 = vmatprep.subr.bf16.mxu0 0
    %108 = vmatpush1.bf16.msra.mxu0 0
    %109 = vmatprep.subr.bf16.mxu0 0
    %110 = vmatpush1.bf16.msra.mxu0 0
    %111 = vmatprep.subr.bf16.mxu0 0
    %112 = vmatpush1.bf16.msra.mxu0 0
    %113 = vmatprep.subr.bf16.mxu0 0
    %114 = vmatpush1.bf16.msra.mxu0 0
    %115 = vmatprep.subr.bf16.mxu0 0
    %116 = vmatpush1.bf16.msra.mxu0 0
    %117 = vmatprep.subr.bf16.mxu0 0
    %118 = vmatpush1.bf16.msra.mxu0 0
    %119 = vmatprep.subr.bf16.mxu0 0
    %120 = vmatpush1.bf16.msra.mxu0 0
    %121 = vmatprep.subr.bf16.mxu0 0
    %122 = vmatpush1.bf16.msra.mxu0 0
    %123 = vmatprep.subr.bf16.mxu0 0
    %124 = vmatpush1.bf16.msra.mxu0 0
    %125 = vmatprep.subr.bf16.mxu0 0
    %126 = vmatpush1.bf16.msra.mxu0 0
    %127 = vmatprep.subr.bf16.mxu0 0
    %128 = vmatpush1.bf16.msra.mxu0 0
    %129 = vmatprep.subr.bf16.mxu0 0
    %130 = vmatpush1.bf16.msra.mxu0 0
    %131 = vmatprep.subr.bf16.mxu0 0
    %132 = vmatpush1.bf16.msra.mxu0 0
    %133 = vmatprep.subr.bf16.mxu0 0
    %134 = vmatpush1.bf16.msra.mxu0 0
    %135 = vmatprep.subr.bf16.mxu0 0
    %136 = vmatpush1.bf16.msra.mxu0 0
    %137 = vmatprep.mubr.bf16.mxu0 0
    %138 = vmatmul.mubr.bf16.gmra.mrb[0].mxu0 %v103
    %v139 = vpop.f32.mrb[0].mxu0
    %v140 = vadd.f32 %v93, %v139
    %v141 = vpop.f32.mrb[0].mxu0
    %v142 = vpop.f32.mrb[0].mxu0
    %v143 = vadd.f32 %v93, %v142
    %v144 = vpop.f32.mrb[0].mxu0
    %145 = vdwg.mxu0
    %v146 = vmax.f32 %v140, 0.0
    %v147 = vmax.f32 %v143, 0.0
    %v148 = vpack.c.bf16 %v147, %v146
    %v149 = vld [vmem:[#allocation7] sm:$0xf]
    %v150 = vld [vmem:[#allocation7 + $0x4] sm:$0xf]
    %v151 = vld [vmem:[#allocation7 + $0x8] sm:$0xf]
    %v152 = vld [vmem:[#allocation7 + $0xc] sm:$0xf]
    %v153 = vld [vmem:[#allocation7 + $0x10] sm:$0xf]
    %v154 = vld [vmem:[#allocation7 + $0x14] sm:$0xf]
    %v155 = vld [vmem:[#allocation7 + $0x18] sm:$0xf]
    %v156 = vld [vmem:[#allocation7 + $0x1c] sm:$0xf]
    %v157 = vld [vmem:[%s4] sm:$0x1]
    %v159 = vlaneseq
    %v160 = vshrl.u32 %v159, 7
    %v161 = vsub.s32 0, %v160
    %v162 = vrot.slane %v157, %v161
    %v172 = vunpack.c.l.b16 %v149
    %v173 = vunpack.c.l.b16 %v150
    %v174 = vunpack.c.l.b16 %v151
    %v175 = vunpack.c.l.b16 %v152
    %v176 = vunpack.c.l.b16 %v153
    %v177 = vunpack.c.l.b16 %v154
    %v178 = vunpack.c.l.b16 %v155
    %v179 = vunpack.c.l.b16 %v156
    %v180 = vpack.c.b16 %v173, %v172
    %v181 = vpack.c.b16 %v175, %v174
    %v182 = vpack.c.b16 %v177, %v176
    %v183 = vpack.c.b16 %v179, %v178
    %vm188 = vcmask 523264
    %v190 = vsel %vm188, %v148, 0
    %192 = vmatprep.subr.bf16.mxu0 0
    %193 = vmatpush1.bf16.msra.mxu0 %v180
    %194 = vmatprep.subr.bf16.mxu0 0
    %195 = vmatpush1.bf16.msra.mxu0 %v181
    %196 = vmatprep.subr.bf16.mxu0 0
    %197 = vmatpush1.bf16.msra.mxu0 %v182
    %198 = vmatprep.subr.bf16.mxu0 0
    %199 = vmatpush1.bf16.msra.mxu0 %v183
    %200 = vmatprep.subr.bf16.mxu0 0
    %201 = vmatpush1.bf16.msra.mxu0 0
    %202 = vmatprep.subr.bf16.mxu0 0
    %203 = vmatpush1.bf16.msra.mxu0 0
    %204 = vmatprep.subr.bf16.mxu0 0
    %205 = vmatpush1.bf16.msra.mxu0 0
    %206 = vmatprep.subr.bf16.mxu0 0
    %207 = vmatpush1.bf16.msra.mxu0 0
    %208 = vmatprep.subr.bf16.mxu0 0
    %209 = vmatpush1.bf16.msra.mxu0 0
    %210 = vmatprep.subr.bf16.mxu0 0
    %211 = vmatpush1.bf16.msra.mxu0 0
    %212 = vmatprep.subr.bf16.mxu0 0
    %213 = vmatpush1.bf16.msra.mxu0 0
    %214 = vmatprep.subr.bf16.mxu0 0
    %215 = vmatpush1.bf16.msra.mxu0 0
    %216 = vmatprep.subr.bf16.mxu0 0
    %217 = vmatpush1.bf16.msra.mxu0 0
    %218 = vmatprep.subr.bf16.mxu0 0
    %219 = vmatpush1.bf16.msra.mxu0 0
    %220 = vmatprep.subr.bf16.mxu0 0
    %221 = vmatpush1.bf16.msra.mxu0 0
    %222 = vmatprep.subr.bf16.mxu0 0
    %223 = vmatpush1.bf16.msra.mxu0 0
    %224 = vmatprep.mubr.bf16.mxu0 0
    %225 = vmatmul.mubr.bf16.gmra.mrb[0].mxu0 %v190
    %v226 = vpop.f32.mrb[0].mxu0
    %v227 = vadd.f32 %v162, %v226
    %v228 = vpop.f32.mrb[0].mxu0
    %v229 = vpop.f32.mrb[0].mxu0
    %v230 = vadd.f32 %v162, %v229
    %v231 = vpop.f32.mrb[0].mxu0
    %232 = vdwg.mxu0
    %v233 = vmax.f32 %v227, 0.0
    %v234 = vmax.f32 %v230, 0.0
    %v235 = vpack.c.bf16 %v234, %v233
    %v236 = vld [vmem:[#allocation8] sm:$0xf]
    %v237 = vld [vmem:[#allocation8 + $0x4] sm:$0xf]
    %v238 = vld [vmem:[#allocation8 + $0x8] sm:$0xf]
    %v239 = vld [vmem:[#allocation8 + $0xc] sm:$0xf]
    %v240 = vld [vmem:[#allocation8 + $0x10] sm:$0xf]
    %v241 = vld [vmem:[#allocation8 + $0x14] sm:$0xf]
    %v242 = vld [vmem:[#allocation8 + $0x18] sm:$0xf]
    %v243 = vld [vmem:[#allocation8 + $0x1c] sm:$0xf]
    %v244 = vld [vmem:[%s6] sm:$0x1]
    %v246 = vlaneseq
    %v247 = vshrl.u32 %v246, 7
    %v248 = vsub.s32 0, %v247
    %v249 = vrot.slane %v244, %v248
    %v259 = vunpack.c.l.b16 %v236
    %v260 = vunpack.c.l.b16 %v237
    %v261 = vunpack.c.l.b16 %v238
    %v262 = vunpack.c.l.b16 %v239
    %v263 = vunpack.c.l.b16 %v240
    %v264 = vunpack.c.l.b16 %v241
    %v265 = vunpack.c.l.b16 %v242
    %v266 = vunpack.c.l.b16 %v243
    %v267 = vpack.c.b16 %v260, %v259
    %v268 = vpack.c.b16 %v262, %v261
    %v269 = vpack.c.b16 %v264, %v263
    %v270 = vpack.c.b16 %v266, %v265
    %v276 = vsel %vm188, %v235, 0
    %278 = vmatprep.subr.bf16.mxu0 0
    %279 = vmatpush1.bf16.msra.mxu0 %v267
    %280 = vmatprep.subr.bf16.mxu0 0
    %281 = vmatpush1.bf16.msra.mxu0 %v268
    %282 = vmatprep.subr.bf16.mxu0 0
    %283 = vmatpush1.bf16.msra.mxu0 %v269
    %284 = vmatprep.subr.bf16.mxu0 0
    %285 = vmatpush1.bf16.msra.mxu0 %v270
    %286 = vmatprep.subr.bf16.mxu0 0
    %287 = vmatpush1.bf16.msra.mxu0 0
    %288 = vmatprep.subr.bf16.mxu0 0
    %289 = vmatpush1.bf16.msra.mxu0 0
    %290 = vmatprep.subr.bf16.mxu0 0
    %291 = vmatpush1.bf16.msra.mxu0 0
    %292 = vmatprep.subr.bf16.mxu0 0
    %293 = vmatpush1.bf16.msra.mxu0 0
    %294 = vmatprep.subr.bf16.mxu0 0
    %295 = vmatpush1.bf16.msra.mxu0 0
    %296 = vmatprep.subr.bf16.mxu0 0
    %297 = vmatpush1.bf16.msra.mxu0 0
    %298 = vmatprep.subr.bf16.mxu0 0
    %299 = vmatpush1.bf16.msra.mxu0 0
    %300 = vmatprep.subr.bf16.mxu0 0
    %301 = vmatpush1.bf16.msra.mxu0 0
    %302 = vmatprep.subr.bf16.mxu0 0
    %303 = vmatpush1.bf16.msra.mxu0 0
    %304 = vmatprep.subr.bf16.mxu0 0
    %305 = vmatpush1.bf16.msra.mxu0 0
    %306 = vmatprep.subr.bf16.mxu0 0
    %307 = vmatpush1.bf16.msra.mxu0 0
    %308 = vmatprep.subr.bf16.mxu0 0
    %309 = vmatpush1.bf16.msra.mxu0 0
    %310 = vmatprep.mubr.bf16.mxu0 0
    %311 = vmatmul.mubr.bf16.gmra.mrb[0].mxu0 %v276
    %v312 = vpop.f32.mrb[0].mxu0
    %v313 = vadd.f32 %v249, %v312
    %v314 = vpop.f32.mrb[0].mxu0
    %v315 = vpop.f32.mrb[0].mxu0
    %v316 = vadd.f32 %v249, %v315
    %v317 = vpop.f32.mrb[0].mxu0
    %318 = vdwg.mxu0
    %v319 = vpack.c.bf16 %v316, %v313
    %v321 = vunpack.c.l.b16 %v319
    %v322 = vunpack.c.h.b16 %v319
    %v323 = vpack.c.b16 %v321, %v321
    %v324 = vpack.c.b16 %v322, %v322
    %327 = vst [vmem:[#allocation10] sm:$0xf] %v323
    %328 = vst [vmem:[#allocation10 + $0x4] sm:$0xf] %v324
    // Predicated region
    $region46: #{tpu_custom_call.1} parent=1 // pred_check
      _
    $region47: #{tpu_custom_call.1} parent=1 // pred_check_branch
      %330 = sbr.rel (0) target = $region49
    $region48: #{tpu_custom_call.1} parent=1 // pred_region
      %s332 = ssub.s32 128, 128
      %333 = vsyncadd [#allocation4], %s332
      %s334 = sshll.u32 [#allocation10], 4
      %s335 = int_to_ptr.vmem [resolvable:$true] %s334
      %340 = dma.vmem_to_hbm [thread:$0]  %s335, 128, %s7, [#allocation4], 64, 64, 4
    $region49: #{tpu_custom_call.1} parent=1 // pred_fallthru
      _
    // Predicated region
    $region50: #{tpu_custom_call.1} parent=1 // pred_check
      _
    $region51: #{tpu_custom_call.1} parent=1 // pred_check_branch
      %342 = sbr.rel (0) target = $region53
    $region52: #{tpu_custom_call.1} parent=1 // pred_region
      %343 = dma.done [#allocation4], 128
    $region53: #{tpu_custom_call.1} parent=1 // pred_fallthru
      _
    %344 = vsyncpa [#allocation3], 1
    %345 = vsyncpa [#allocation6], 1
    %346 = vsyncpa [#allocation9], 1
    %347 = vsyncpa [#allocation4], 1

</llo_original>
